<compile_context>
chip_gen: v6e
topology: v6e:2x2x1
jax: 0.10.0
libtpu: 0.0.40
codegen_flags: <defaults>
</compile_context>

<pallas_src>
import math

import jax
import jax.numpy as jnp
from jax.experimental import pallas as pl
from jax.experimental.pallas import tpu as pltpu

_SUBLANE = 8


def _round_up(x, m):
    return ((x + m - 1) // m) * m


def _dqn_kernel(x_ref, w0_ref, b0_ref, w1_ref, b1_ref, w2_ref, b2_ref, o_ref):
    # l0 + ReLU (f32 accumulation on the MXU; bias add in f32)
    h = jnp.dot(x_ref[...], w0_ref[...], preferred_element_type=jnp.float32)
    h = jnp.maximum(h + b0_ref[...], 0.0).astype(w1_ref.dtype)

    # l1 + ReLU
    h = jnp.dot(h, w1_ref[...], preferred_element_type=jnp.float32)
    h = jnp.maximum(h + b1_ref[...], 0.0).astype(w2_ref.dtype)

    # l2 (no activation)
    out = jnp.dot(h, w2_ref[...], preferred_element_type=jnp.float32) + b2_ref[...]
    o_ref[...] = out.astype(o_ref.dtype)


def prepare_params(params, compute_dtype=jnp.float32):
    """One-time param prep: cast weights to the MXU compute dtype.

    Biases stay f32 (added after the f32-accumulated dot). Call this once,
    outside the per-step forward, so no casts/pads recur per call.
    """
    return {
        "w0": params["w0"].astype(compute_dtype),
        "w1": params["w1"].astype(compute_dtype),
        "w2": params["w2"].astype(compute_dtype),
        "b0": params["b0"].astype(jnp.float32),
        "b1": params["b1"].astype(jnp.float32),
        "b2": params["b2"].astype(jnp.float32),
    }


def dqn_forward(state, params, *, tile_b=8192):
    """Fused DQN MLP forward.

    state:  (B, D_in) float array
    params: dict with w0 (D_in,64), b0 (1,64), w1 (64,64), b1 (1,64),
            w2 (64,n_out), b2 (1,n_out)   (see prepare_params)
    tile_b: batch tile size for the grid when B > tile_b.
    Returns (B, n_out) float32.
    """
    w0, b0 = params["w0"], params["b0"]
    w1, b1 = params["w1"], params["b1"]
    w2, b2 = params["w2"], params["b2"]

    B, d_in = state.shape
    n_out = w2.shape[1]

    compute_dtype = w0.dtype
    x = state if state.dtype == compute_dtype else state.astype(compute_dtype)

    if B <= tile_b:
        # Acting / small-batch path: one grid step, block == full array
        # (legal for any B), no padding, no partial-tile masking.
        tb = B
        num_steps = 1
    else:
        # Training / replay path: batch-tiled grid with a partial last tile.
        tb = _round_up(tile_b, _SUBLANE)
        num_steps = pl.cdiv(B, tb)
        # v7x megacore: keep the step count even so the "parallel" batch axis
        # splits evenly across the two TensorCores (harmless on v5e/v6e).
        if num_steps % 2 == 1:
            tb = _round_up(pl.cdiv(B, num_steps + 1), _SUBLANE)
            num_steps = pl.cdiv(B, tb)

    # Weights/biases stay resident in VMEM across grid steps (no re-DMA).
    resident = lambda a: pl.BlockSpec(a.shape, lambda i: (0, 0))

    out = pl.pallas_call(
        _dqn_kernel,
        out_shape=jax.ShapeDtypeStruct((B, n_out), jnp.float32),
        grid=(num_steps,),
        in_specs=[
            pl.BlockSpec((tb, d_in), lambda i: (i, 0)),   # x: tiled on batch
            resident(w0), resident(b0),
            resident(w1), resident(b1),
            resident(w2), resident(b2),
        ],
        out_specs=pl.BlockSpec((tb, n_out), lambda i: (i, 0)),
        compiler_params=pltpu.CompilerParams(
            dimension_semantics=("parallel",),
        ),
    )(x, w0, b0, w1, b1, w2, b2)

    return out


def _xavier_uniform(key, fan_in, fan_out):
    # torch.nn.init.xavier_uniform_: U(-a, a), a = sqrt(6 / (fan_in + fan_out))
    bound = math.sqrt(6.0 / (fan_in + fan_out))
    return jax.random.uniform(
        key, (fan_in, fan_out), dtype=jnp.float32, minval=-bound, maxval=bound
    )


def init_params(key, input_dim, outputs_count, hidden=64):
    k0, k1, k2 = jax.random.split(key, 3)
    return {
        "w0": _xavier_uniform(k0, input_dim, hidden),
        "b0": jnp.zeros((1, hidden), jnp.float32),
        "w1": _xavier_uniform(k1, hidden, hidden),
        "b1": jnp.zeros((1, hidden), jnp.float32),
        "w2": _xavier_uniform(k2, hidden, outputs_count),
        "b2": jnp.zeros((1, outputs_count), jnp.float32),
    }


def _ref(x, p):
    h = jnp.maximum(x @ p["w0"] + p["b0"], 0.0)
    h = jnp.maximum(h @ p["w1"] + p["b1"], 0.0)
    return h @ p["w2"] + p["b2"]


if __name__ == "__main__":
    # LunarLander-v2: observation dim = 8, action count = 4
    INPUT_DIM = 8
    OUTPUTS = 4

    key = jax.random.PRNGKey(0)
    k_params, k_small, k_big = jax.random.split(key, 3)
    raw_params = init_params(k_params, INPUT_DIM, OUTPUTS)

    params_f32 = prepare_params(raw_params, jnp.float32)
    params_bf16 = prepare_params(raw_params, jnp.bfloat16)

    # --- small-batch (acting) path: B=2, single un-padded grid step ---
    state_small = jax.random.normal(k_small, (2, INPUT_DIM), dtype=jnp.float32)
    out_small = jax.block_until_ready(dqn_forward(state_small, params_f32))
    exp_small = _ref(state_small, raw_params)
    assert out_small.shape == (2, OUTPUTS)
    assert jnp.allclose(out_small, exp_small, atol=1e-5, rtol=1e-5)

    # --- large-batch (replay/training) path: multi-step grid, partial last
    #     tile, even step count (6 steps of tb=176 rows for B=1037) ---
    state_big = jax.random.normal(k_big, (1037, INPUT_DIM), dtype=jnp.float32)
    out_big = jax.block_until_ready(dqn_forward(state_big, params_f32, tile_b=256))
    exp_big = _ref(state_big, raw_params)
    assert out_big.shape == (1037, OUTPUTS)
    assert jnp.allclose(out_big, exp_big, atol=1e-5, rtol=1e-5)

    # --- default large tile on the same batch (single step, B <= tile_b) ---
    out_big2 = jax.block_until_ready(dqn_forward(state_big, params_f32))
    assert jnp.allclose(out_big2, exp_big, atol=1e-5, rtol=1e-5)

    # --- bf16 weights + activations (f32 accumulation) ---
    out_bf16 = jax.block_until_ready(
        dqn_forward(state_big, params_bf16, tile_b=256)
    )
    assert out_bf16.shape == (1037, OUTPUTS)
    assert jnp.allclose(out_bf16, exp_big, atol=1e-1, rtol=1e-1)

    print("KERNEL_OK")
</pallas_src>

<mosaic_0001>
module attributes {stable_mosaic.version = 11 : i64} {
  func.func @_dqn_kernel(%arg0: i32, %arg1: memref<2x8xf32, #tpu.memory_space<vmem>>, %arg2: memref<8x64xf32, #tpu.memory_space<vmem>>, %arg3: memref<1x64xf32, #tpu.memory_space<vmem>>, %arg4: memref<64x64xf32, #tpu.memory_space<vmem>>, %arg5: memref<1x64xf32, #tpu.memory_space<vmem>>, %arg6: memref<64x4xf32, #tpu.memory_space<vmem>>, %arg7: memref<1x4xf32, #tpu.memory_space<vmem>>, %arg8: memref<2x4xf32, #tpu.memory_space<vmem>>) attributes {dimension_semantics = [#tpu.dimension_semantics<parallel>], iteration_bounds = array<i64: 1>, scalar_prefetch = 0 : i64, scratch_operands = 0 : i64, tpu.core_type = #tpu.core_type<tc>, window_params = [{transform_indices = @transform_0, window_bounds = array<i64: 2, 8>}, {pipeline_mode = #tpu.pipeline_mode<synchronous>, transform_indices = @transform_1, window_bounds = array<i64: 8, 64>}, {pipeline_mode = #tpu.pipeline_mode<synchronous>, transform_indices = @transform_2, window_bounds = array<i64: 1, 64>}, {pipeline_mode = #tpu.pipeline_mode<synchronous>, transform_indices = @transform_3, window_bounds = array<i64: 64, 64>}, {pipeline_mode = #tpu.pipeline_mode<synchronous>, transform_indices = @transform_4, window_bounds = array<i64: 1, 64>}, {pipeline_mode = #tpu.pipeline_mode<synchronous>, transform_indices = @transform_5, window_bounds = array<i64: 64, 4>}, {pipeline_mode = #tpu.pipeline_mode<synchronous>, transform_indices = @transform_6, window_bounds = array<i64: 1, 4>}, {transform_indices = @transform_7, window_bounds = array<i64: 2, 4>}]} {
    %c0 = arith.constant 0 : index
    %c0_0 = arith.constant 0 : index
    %0 = vector.load %arg1[%c0, %c0_0] : memref<2x8xf32, #tpu.memory_space<vmem>>, vector<2x8xf32>
    %c0_1 = arith.constant 0 : index
    %c0_2 = arith.constant 0 : index
    %1 = vector.load %arg2[%c0_1, %c0_2] : memref<8x64xf32, #tpu.memory_space<vmem>>, vector<8x64xf32>
    %cst = arith.constant dense<0.000000e+00> : vector<2x64xf32>
    %2 = tpu.matmul %0, %1, %cst {dimension_numbers = #tpu.dot_dimension_numbers<[1], [0], [0], [1], [0, 0, 1, 1], [], []>} : vector<2x8xf32>, vector<8x64xf32>, vector<2x64xf32> -> vector<2x64xf32>
    %c0_3 = arith.constant 0 : index
    %c0_4 = arith.constant 0 : index
    %3 = vector.load %arg3[%c0_3, %c0_4] : memref<1x64xf32, #tpu.memory_space<vmem>>, vector<1x64xf32>
    %4 = vector.broadcast %3 : vector<1x64xf32> to vector<2x64xf32>
    %5 = arith.addf %2, %4 : vector<2x64xf32>
    %cst_5 = arith.constant 0.000000e+00 : f32
    %6 = vector.broadcast %cst_5 : f32 to vector<2x64xf32>
    %7 = arith.maximumf %5, %6 : vector<2x64xf32>
    %c0_6 = arith.constant 0 : index
    %c0_7 = arith.constant 0 : index
    %8 = vector.load %arg4[%c0_6, %c0_7] : memref<64x64xf32, #tpu.memory_space<vmem>>, vector<64x64xf32>
    %cst_8 = arith.constant dense<0.000000e+00> : vector<2x64xf32>
    %9 = tpu.matmul %7, %8, %cst_8 {dimension_numbers = #tpu.dot_dimension_numbers<[1], [0], [0], [1], [0, 0, 1, 1], [], []>} : vector<2x64xf32>, vector<64x64xf32>, vector<2x64xf32> -> vector<2x64xf32>
    %c0_9 = arith.constant 0 : index
    %c0_10 = arith.constant 0 : index
    %10 = vector.load %arg5[%c0_9, %c0_10] : memref<1x64xf32, #tpu.memory_space<vmem>>, vector<1x64xf32>
    %11 = vector.broadcast %10 : vector<1x64xf32> to vector<2x64xf32>
    %12 = arith.addf %9, %11 : vector<2x64xf32>
    %cst_11 = arith.constant 0.000000e+00 : f32
    %13 = vector.broadcast %cst_11 : f32 to vector<2x64xf32>
    %14 = arith.maximumf %12, %13 : vector<2x64xf32>
    %c0_12 = arith.constant 0 : index
    %c0_13 = arith.constant 0 : index
    %15 = vector.load %arg6[%c0_12, %c0_13] : memref<64x4xf32, #tpu.memory_space<vmem>>, vector<64x4xf32>
    %cst_14 = arith.constant dense<0.000000e+00> : vector<2x4xf32>
    %16 = tpu.matmul %14, %15, %cst_14 {dimension_numbers = #tpu.dot_dimension_numbers<[1], [0], [0], [1], [0, 0, 1, 1], [], []>} : vector<2x64xf32>, vector<64x4xf32>, vector<2x4xf32> -> vector<2x4xf32>
    %c0_15 = arith.constant 0 : index
    %c0_16 = arith.constant 0 : index
    %17 = vector.load %arg7[%c0_15, %c0_16] : memref<1x4xf32, #tpu.memory_space<vmem>>, vector<1x4xf32>
    %18 = vector.broadcast %17 : vector<1x4xf32> to vector<2x4xf32>
    %19 = arith.addf %16, %18 : vector<2x4xf32>
    %c0_17 = arith.constant 0 : index
    %c0_18 = arith.constant 0 : index
    %20 = vector.load %arg8[%c0_17, %c0_18] : memref<2x4xf32, #tpu.memory_space<vmem>>, vector<2x4xf32>
    tpu.vector_store %arg8[%c0_17, %c0_18], %19 {strides = array<i32>} : memref<2x4xf32, #tpu.memory_space<vmem>>, vector<2x4xf32>,
    return
  }
  func.func @transform_0(%arg0: i32) -> (i32, i32) {
    %c0_i32 = arith.constant 0 : i32
    %c0_i32_0 = arith.constant 0 : i32
    return %arg0, %c0_i32 : i32, i32
  }
  func.func @transform_1(%arg0: i32) -> (i32, i32) {
    %c0_i32 = arith.constant 0 : i32
    %c0_i32_0 = arith.constant 0 : i32
    %c0_i32_1 = arith.constant 0 : i32
    return %c0_i32, %c0_i32_0 : i32, i32
  }
  func.func @transform_2(%arg0: i32) -> (i32, i32) {
    %c0_i32 = arith.constant 0 : i32
    %c0_i32_0 = arith.constant 0 : i32
    %c0_i32_1 = arith.constant 0 : i32
    return %c0_i32, %c0_i32_0 : i32, i32
  }
  func.func @transform_3(%arg0: i32) -> (i32, i32) {
    %c0_i32 = arith.constant 0 : i32
    %c0_i32_0 = arith.constant 0 : i32
    %c0_i32_1 = arith.constant 0 : i32
    return %c0_i32, %c0_i32_0 : i32, i32
  }
  func.func @transform_4(%arg0: i32) -> (i32, i32) {
    %c0_i32 = arith.constant 0 : i32
    %c0_i32_0 = arith.constant 0 : i32
    %c0_i32_1 = arith.constant 0 : i32
    return %c0_i32, %c0_i32_0 : i32, i32
  }
  func.func @transform_5(%arg0: i32) -> (i32, i32) {
    %c0_i32 = arith.constant 0 : i32
    %c0_i32_0 = arith.constant 0 : i32
    %c0_i32_1 = arith.constant 0 : i32
    return %c0_i32, %c0_i32_0 : i32, i32
  }
  func.func @transform_6(%arg0: i32) -> (i32, i32) {
    %c0_i32 = arith.constant 0 : i32
    %c0_i32_0 = arith.constant 0 : i32
    %c0_i32_1 = arith.constant 0 : i32
    return %c0_i32, %c0_i32_0 : i32, i32
  }
  func.func @transform_7(%arg0: i32) -> (i32, i32) {
    %c0_i32 = arith.constant 0 : i32
    %c0_i32_0 = arith.constant 0 : i32
    return %arg0, %c0_i32 : i32, i32
  }
}

</mosaic_0001>

<llo_original>
// kernel: tpu_custom_call.1
$region0: #{tpu_custom_call.1}
  #allocation0 [shape = 'u32[]', space=smem, size = 0x4, offset = 0x4, fixed_abs, tag = 'smem constant byte address 0x4 - core index']
  #allocation1 [shape = 'u32[144,128]{1,0:T(1,128)}', space=vmem, size = 0x12000, scoped, tag = 'internal scratch']
  %s0 = inlined_call_operand.hbm [shape: f32[2,8], index: 0, kind: input, shape index: {}]
  %s1 = inlined_call_operand.vmem [shape: f32[8,64], index: 1, kind: input, shape index: {}]
  %s2 = inlined_call_operand.vmem [shape: f32[1,64], index: 2, kind: input, shape index: {}]
  %s3 = inlined_call_operand.vmem [shape: f32[64,64], index: 3, kind: input, shape index: {}]
  %s4 = inlined_call_operand.hbm [shape: f32[1,64], index: 4, kind: input, shape index: {}]
  %s5 = inlined_call_operand.vmem [shape: f32[64,4], index: 5, kind: input, shape index: {}]
  %s6 = inlined_call_operand.vmem [shape: f32[1,4], index: 6, kind: input, shape index: {}]
  %s7 = inlined_call_operand.hbm [shape: f32[2,4], index: 7, kind: output, shape index: {}]
  %s8 = sld [smem:[#allocation0]]
  $region46: #{tpu_custom_call.1} parent=0
    _
  %s10 = ssub.s32 1, %s8
  %s11 = scalar_select 0, %s10, %s8
  $region1: #{tpu_custom_call.1} parent=0
    #allocation2 [shape = 'u8[1024]{0}', space=vmem, size = 0x400, scoped, tag = 'input window, operand 0, single buffered']
    #allocation3 [shape = 's32[1]{0}', space=sflag, size = 0x4, scoped, tag = 'scoped memory for tpu_custom_call.1']
    #allocation4 [shape = 's32[1]{0}', space=sflag, size = 0x4, scoped, tag = 'scoped memory for tpu_custom_call.1']
    #allocation5 [shape = 'u8[512]{0}', space=vmem, size = 0x400, scoped, tag = 'input window, operand 4, single buffered']
    #allocation6 [shape = 's32[1]{0}', space=sflag, size = 0x4, scoped, tag = 'scoped memory for tpu_custom_call.1']
    #allocation7 [shape = 'u8[1024]{0}', space=vmem, size = 0x400, scoped, tag = 'output window, operand 0, single buffered']
    %12 = vsyncpa [#allocation3], 0
    %13 = vsyncpa [#allocation6], 0
    %14 = vsyncpa [#allocation4], 0
    // Predicated region
    $region2: #{tpu_custom_call.1} parent=1 // pred_check
      _
    $region3: #{tpu_custom_call.1} parent=1 // pred_check_branch
      %16 = sbr.rel (0) target = $region5
    $region4: #{tpu_custom_call.1} parent=1 // pred_region
      %s18 = ssub.s32 32, 32
      %19 = vsyncadd [#allocation3], %s18
      %s21 = sshll.u32 [#allocation2], 4
      %s22 = int_to_ptr.vmem [resolvable:$true] %s21
      %24 = dma.hbm_to_vmem [thread:$0]  %s0, 32, %s22, [#allocation3]
    $region5: #{tpu_custom_call.1} parent=1 // pred_fallthru
      _
    // Predicated region
    $region6: #{tpu_custom_call.1} parent=1 // pred_check
      _
    $region7: #{tpu_custom_call.1} parent=1 // pred_check_branch
      %26 = sbr.rel (0) target = $region9
    $region8: #{tpu_custom_call.1} parent=1 // pred_region
      _
    $region9: #{tpu_custom_call.1} parent=1 // pred_fallthru
      _
    // Predicated region
    $region10: #{tpu_custom_call.1} parent=1 // pred_check
      _
    $region11: #{tpu_custom_call.1} parent=1 // pred_check_branch
      %28 = sbr.rel (0) target = $region13
    $region12: #{tpu_custom_call.1} parent=1 // pred_region
      _
    $region13: #{tpu_custom_call.1} parent=1 // pred_fallthru
      _
    // Predicated region
    $region14: #{tpu_custom_call.1} parent=1 // pred_check
      _
    $region15: #{tpu_custom_call.1} parent=1 // pred_check_branch
      %30 = sbr.rel (0) target = $region17
    $region16: #{tpu_custom_call.1} parent=1 // pred_region
      _
    $region17: #{tpu_custom_call.1} parent=1 // pred_fallthru
      _
    // Predicated region
    $region18: #{tpu_custom_call.1} parent=1 // pred_check
      _
    $region19: #{tpu_custom_call.1} parent=1 // pred_check_branch
      %32 = sbr.rel (0) target = $region21
    $region20: #{tpu_custom_call.1} parent=1 // pred_region
      %s34 = ssub.s32 16, 16
      %35 = vsyncadd [#allocation6], %s34
      %s37 = sshll.u32 [#allocation5], 4
      %s38 = int_to_ptr.vmem [resolvable:$true] %s37
      %40 = dma.hbm_to_vmem [thread:$0]  %s4, 16, %s38, [#allocation6]
    $region21: #{tpu_custom_call.1} parent=1 // pred_fallthru
      _
    // Predicated region
    $region22: #{tpu_custom_call.1} parent=1 // pred_check
      _
    $region23: #{tpu_custom_call.1} parent=1 // pred_check_branch
      %42 = sbr.rel (0) target = $region25
    $region24: #{tpu_custom_call.1} parent=1 // pred_region
      _
    $region25: #{tpu_custom_call.1} parent=1 // pred_fallthru
      _
    // Predicated region
    $region26: #{tpu_custom_call.1} parent=1 // pred_check
      _
    $region27: #{tpu_custom_call.1} parent=1 // pred_check_branch
      %44 = sbr.rel (0) target = $region29
    $region28: #{tpu_custom_call.1} parent=1 // pred_region
      _
    $region29: #{tpu_custom_call.1} parent=1 // pred_fallthru
      _
    // Predicated region
    $region30: #{tpu_custom_call.1} parent=1 // pred_check
      _
    $region31: #{tpu_custom_call.1} parent=1 // pred_check_branch
      %46 = sbr.rel (0) target = $region33
    $region32: #{tpu_custom_call.1} parent=1 // pred_region
      %47 = dma.done [#allocation3], 32
    $region33: #{tpu_custom_call.1} parent=1 // pred_fallthru
      _
    // Predicated region
    $region34: #{tpu_custom_call.1} parent=1 // pred_check
      _
    $region35: #{tpu_custom_call.1} parent=1 // pred_check_branch
      %49 = sbr.rel (0) target = $region37
    $region36: #{tpu_custom_call.1} parent=1 // pred_region
      %50 = dma.done [#allocation6], 16
    $region37: #{tpu_custom_call.1} parent=1 // pred_fallthru
      _
    %v51 = vld [vmem:[#allocation2] sm:$0x3]
    %v52 = vld [vmem:[%s1] sm:$0xff]
    %v53 = vld [vmem:[%s2] sm:$0x1]
    %v55 = vlaneseq
    %v56 = vshrl.u32 %v55, 7
    %v57 = vsub.s32 0, %v56
    %v58 = vrot.slane %v53, %v57
    %vm60 = vcmask 64512
    %v62 = vsel %vm60, %v51, 0
    %64 = vmatprep.subr.mxu0 0.0
    %65 = vmatpush1.msra.mxu0 0.0
    %66 = vmatprep.subr.mxu0 0.0
    %67 = vmatpush1.msra.mxu0 0.0
    %68 = vmatprep.subr.mxu0 0.0
    %69 = vmatpush1.msra.mxu0 0.0
    %70 = vmatprep.subr.mxu0 0.0
    %71 = vmatpush1.msra.mxu0 0.0
    %72 = vmatprep.subr.mxu0 0.0
    %73 = vmatpush1.msra.mxu0 0.0
    %74 = vmatprep.subr.mxu0 0.0
    %75 = vmatpush1.msra.mxu0 0.0
    %76 = vmatprep.subr.mxu0 0.0
    %77 = vmatpush1.msra.mxu0 0.0
    %78 = vmatprep.subr.mxu0 0.0
    %79 = vmatpush1.msra.mxu0 0.0
    %80 = vmatprep.subr.mxu0 0.0
    %81 = vmatpush1.msra.mxu0 0.0
    %82 = vmatprep.subr.mxu0 0.0
    %83 = vmatpush1.msra.mxu0 0.0
    %84 = vmatprep.subr.mxu0 0.0
    %85 = vmatpush1.msra.mxu0 0.0
    %86 = vmatprep.subr.mxu0 0.0
    %87 = vmatpush1.msra.mxu0 0.0
    %88 = vmatprep.subr.mxu0 0.0
    %89 = vmatpush1.msra.mxu0 0.0
    %90 = vmatprep.subr.mxu0 0.0
    %91 = vmatpush1.msra.mxu0 0.0
    %92 = vmatprep.subr.mxu0 0.0
    %93 = vmatpush1.msra.mxu0 0.0
    %94 = vmatprep.subr.mxu0 0.0
    %95 = vmatpush1.msra.mxu0 %v52
    %96 = vmatprep.subr.mxu0 0.0
    %97 = vmatpush2.msra.mxu0 0.0
    %98 = vmatprep.subr.mxu0 0.0
    %99 = vmatpush2.msra.mxu0 0.0
    %100 = vmatprep.subr.mxu0 0.0
    %101 = vmatpush2.msra.mxu0 0.0
    %102 = vmatprep.subr.mxu0 0.0
    %103 = vmatpush2.msra.mxu0 0.0
    %104 = vmatprep.subr.mxu0 0.0
    %105 = vmatpush2.msra.mxu0 0.0
    %106 = vmatprep.subr.mxu0 0.0
    %107 = vmatpush2.msra.mxu0 0.0
    %108 = vmatprep.subr.mxu0 0.0
    %109 = vmatpush2.msra.mxu0 0.0
    %110 = vmatprep.subr.mxu0 0.0
    %111 = vmatpush2.msra.mxu0 0.0
    %112 = vmatprep.subr.mxu0 0.0
    %113 = vmatpush2.msra.mxu0 0.0
    %114 = vmatprep.subr.mxu0 0.0
    %115 = vmatpush2.msra.mxu0 0.0
    %116 = vmatprep.subr.mxu0 0.0
    %117 = vmatpush2.msra.mxu0 0.0
    %118 = vmatprep.subr.mxu0 0.0
    %119 = vmatpush2.msra.mxu0 0.0
    %120 = vmatprep.subr.mxu0 0.0
    %121 = vmatpush2.msra.mxu0 0.0
    %122 = vmatprep.subr.mxu0 0.0
    %123 = vmatpush2.msra.mxu0 0.0
    %124 = vmatprep.subr.mxu0 0.0
    %125 = vmatpush2.msra.mxu0 0.0
    %126 = vmatprep.subr.mxu0 0.0
    %127 = vmatpush2.msra.mxu0 0.0
    %128 = vmatprep.mubr.f32.mxu0 0.0
    %129 = vmatmul.mubr.f32.gmra.mxu0 %v62
    %v130 = vpop.f32.mrf.mxu0
    %v131 = vadd.f32 %v58, %v130
    %v132 = vpop.f32.mrf.mxu0
    %133 = vdwg.mxu0
    %v134 = vmax.f32 %v131, 0.0
    %v135 = vld [vmem:[%s3] sm:$0xff]
    %v136 = vld [vmem:[%s3 + $0x8] sm:$0xff]
    %v137 = vld [vmem:[%s3 + $0x10] sm:$0xff]
    %v138 = vld [vmem:[%s3 + $0x18] sm:$0xff]
    %v139 = vld [vmem:[%s3 + $0x20] sm:$0xff]
    %v140 = vld [vmem:[%s3 + $0x28] sm:$0xff]
    %v141 = vld [vmem:[%s3 + $0x30] sm:$0xff]
    %v142 = vld [vmem:[%s3 + $0x38] sm:$0xff]
    %v143 = vld [vmem:[#allocation5] sm:$0x1]
    %v145 = vlaneseq
    %v146 = vshrl.u32 %v145, 7
    %v147 = vsub.s32 0, %v146
    %v148 = vrot.slane %v143, %v147
    %vm150 = vcmask 523264
    %v152 = vsel %vm150, %v134, 0
    %154 = vmatprep.subr.mxu0 0.0
    %155 = vmatpush1.msra.mxu0 0.0
    %156 = vmatprep.subr.mxu0 0.0
    %157 = vmatpush1.msra.mxu0 0.0
    %158 = vmatprep.subr.mxu0 0.0
    %159 = vmatpush1.msra.mxu0 0.0
    %160 = vmatprep.subr.mxu0 0.0
    %161 = vmatpush1.msra.mxu0 0.0
    %162 = vmatprep.subr.mxu0 0.0
    %163 = vmatpush1.msra.mxu0 0.0
    %164 = vmatprep.subr.mxu0 0.0
    %165 = vmatpush1.msra.mxu0 0.0
    %166 = vmatprep.subr.mxu0 0.0
    %167 = vmatpush1.msra.mxu0 0.0
    %168 = vmatprep.subr.mxu0 0.0
    %169 = vmatpush1.msra.mxu0 0.0
    %170 = vmatprep.subr.mxu0 0.0
    %171 = vmatpush1.msra.mxu0 %v142
    %172 = vmatprep.subr.mxu0 0.0
    %173 = vmatpush1.msra.mxu0 %v141
    %174 = vmatprep.subr.mxu0 0.0
    %175 = vmatpush1.msra.mxu0 %v140
    %176 = vmatprep.subr.mxu0 0.0
    %177 = vmatpush1.msra.mxu0 %v139
    %178 = vmatprep.subr.mxu0 0.0
    %179 = vmatpush1.msra.mxu0 %v138
    %180 = vmatprep.subr.mxu0 0.0
    %181 = vmatpush1.msra.mxu0 %v137
    %182 = vmatprep.subr.mxu0 0.0
    %183 = vmatpush1.msra.mxu0 %v136
    %184 = vmatprep.subr.mxu0 0.0
    %185 = vmatpush1.msra.mxu0 %v135
    %186 = vmatprep.subr.mxu0 0.0
    %187 = vmatpush2.msra.mxu0 0.0
    %188 = vmatprep.subr.mxu0 0.0
    %189 = vmatpush2.msra.mxu0 0.0
    %190 = vmatprep.subr.mxu0 0.0
    %191 = vmatpush2.msra.mxu0 0.0
    %192 = vmatprep.subr.mxu0 0.0
    %193 = vmatpush2.msra.mxu0 0.0
    %194 = vmatprep.subr.mxu0 0.0
    %195 = vmatpush2.msra.mxu0 0.0
    %196 = vmatprep.subr.mxu0 0.0
    %197 = vmatpush2.msra.mxu0 0.0
    %198 = vmatprep.subr.mxu0 0.0
    %199 = vmatpush2.msra.mxu0 0.0
    %200 = vmatprep.subr.mxu0 0.0
    %201 = vmatpush2.msra.mxu0 0.0
    %202 = vmatprep.subr.mxu0 0.0
    %203 = vmatpush2.msra.mxu0 0.0
    %204 = vmatprep.subr.mxu0 0.0
    %205 = vmatpush2.msra.mxu0 0.0
    %206 = vmatprep.subr.mxu0 0.0
    %207 = vmatpush2.msra.mxu0 0.0
    %208 = vmatprep.subr.mxu0 0.0
    %209 = vmatpush2.msra.mxu0 0.0
    %210 = vmatprep.subr.mxu0 0.0
    %211 = vmatpush2.msra.mxu0 0.0
    %212 = vmatprep.subr.mxu0 0.0
    %213 = vmatpush2.msra.mxu0 0.0
    %214 = vmatprep.subr.mxu0 0.0
    %215 = vmatpush2.msra.mxu0 0.0
    %216 = vmatprep.subr.mxu0 0.0
    %217 = vmatpush2.msra.mxu0 0.0
    %218 = vmatprep.mubr.f32.mxu0 0.0
    %219 = vmatmul.mubr.f32.gmra.mxu0 %v152
    %v220 = vpop.f32.mrf.mxu0
    %v221 = vadd.f32 %v148, %v220
    %v222 = vpop.f32.mrf.mxu0
    %223 = vdwg.mxu0
    %v224 = vmax.f32 %v221, 0.0
    %v225 = vld [vmem:[%s5] sm:$0xff]
    %v226 = vld [vmem:[%s5 + $0x8] sm:$0xff]
    %v227 = vld [vmem:[%s5 + $0x10] sm:$0xff]
    %v228 = vld [vmem:[%s5 + $0x18] sm:$0xff]
    %v229 = vld [vmem:[%s5 + $0x20] sm:$0xff]
    %v230 = vld [vmem:[%s5 + $0x28] sm:$0xff]
    %v231 = vld [vmem:[%s5 + $0x30] sm:$0xff]
    %v232 = vld [vmem:[%s5 + $0x38] sm:$0xff]
    %v233 = vld [vmem:[%s6] sm:$0x1]
    %v235 = vlaneseq
    %v236 = vshrl.u32 %v235, 7
    %v237 = vsub.s32 0, %v236
    %v238 = vrot.slane %v233, %v237
    %v241 = vsel %vm150, %v224, 0
    %243 = vmatprep.subr.mxu0 0.0
    %244 = vmatpush1.msra.mxu0 0.0
    %245 = vmatprep.subr.mxu0 0.0
    %246 = vmatpush1.msra.mxu0 0.0
    %247 = vmatprep.subr.mxu0 0.0
    %248 = vmatpush1.msra.mxu0 0.0
    %249 = vmatprep.subr.mxu0 0.0
    %250 = vmatpush1.msra.mxu0 0.0
    %251 = vmatprep.subr.mxu0 0.0
    %252 = vmatpush1.msra.mxu0 0.0
    %253 = vmatprep.subr.mxu0 0.0
    %254 = vmatpush1.msra.mxu0 0.0
    %255 = vmatprep.subr.mxu0 0.0
    %256 = vmatpush1.msra.mxu0 0.0
    %257 = vmatprep.subr.mxu0 0.0
    %258 = vmatpush1.msra.mxu0 0.0
    %259 = vmatprep.subr.mxu0 0.0
    %260 = vmatpush1.msra.mxu0 %v232
    %261 = vmatprep.subr.mxu0 0.0
    %262 = vmatpush1.msra.mxu0 %v231
    %263 = vmatprep.subr.mxu0 0.0
    %264 = vmatpush1.msra.mxu0 %v230
    %265 = vmatprep.subr.mxu0 0.0
    %266 = vmatpush1.msra.mxu0 %v229
    %267 = vmatprep.subr.mxu0 0.0
    %268 = vmatpush1.msra.mxu0 %v228
    %269 = vmatprep.subr.mxu0 0.0
    %270 = vmatpush1.msra.mxu0 %v227
    %271 = vmatprep.subr.mxu0 0.0
    %272 = vmatpush1.msra.mxu0 %v226
    %273 = vmatprep.subr.mxu0 0.0
    %274 = vmatpush1.msra.mxu0 %v225
    %275 = vmatprep.subr.mxu0 0.0
    %276 = vmatpush2.msra.mxu0 0.0
    %277 = vmatprep.subr.mxu0 0.0
    %278 = vmatpush2.msra.mxu0 0.0
    %279 = vmatprep.subr.mxu0 0.0
    %280 = vmatpush2.msra.mxu0 0.0
    %281 = vmatprep.subr.mxu0 0.0
    %282 = vmatpush2.msra.mxu0 0.0
    %283 = vmatprep.subr.mxu0 0.0
    %284 = vmatpush2.msra.mxu0 0.0
    %285 = vmatprep.subr.mxu0 0.0
    %286 = vmatpush2.msra.mxu0 0.0
    %287 = vmatprep.subr.mxu0 0.0
    %288 = vmatpush2.msra.mxu0 0.0
    %289 = vmatprep.subr.mxu0 0.0
    %290 = vmatpush2.msra.mxu0 0.0
    %291 = vmatprep.subr.mxu0 0.0
    %292 = vmatpush2.msra.mxu0 0.0
    %293 = vmatprep.subr.mxu0 0.0
    %294 = vmatpush2.msra.mxu0 0.0
    %295 = vmatprep.subr.mxu0 0.0
    %296 = vmatpush2.msra.mxu0 0.0
    %297 = vmatprep.subr.mxu0 0.0
    %298 = vmatpush2.msra.mxu0 0.0
    %299 = vmatprep.subr.mxu0 0.0
    %300 = vmatpush2.msra.mxu0 0.0
    %301 = vmatprep.subr.mxu0 0.0
    %302 = vmatpush2.msra.mxu0 0.0
    %303 = vmatprep.subr.mxu0 0.0
    %304 = vmatpush2.msra.mxu0 0.0
    %305 = vmatprep.subr.mxu0 0.0
    %306 = vmatpush2.msra.mxu0 0.0
    %307 = vmatprep.mubr.f32.mxu0 0.0
    %308 = vmatmul.mubr.f32.gmra.mxu0 %v241
    %v309 = vpop.f32.mrf.mxu0
    %v310 = vadd.f32 %v238, %v309
    %v311 = vpop.f32.mrf.mxu0
    %312 = vdwg.mxu0
    %vm313 = vcmask 25600
    %314 = vst.msk [vmem:[#allocation7] sm:$0x3] %vm313, %v310
    // Predicated region
    $region38: #{tpu_custom_call.1} parent=1 // pred_check
      _
    $region39: #{tpu_custom_call.1} parent=1 // pred_check_branch
      %316 = sbr.rel (0) target = $region41
    $region40: #{tpu_custom_call.1} parent=1 // pred_region
      %s318 = ssub.s32 32, 32
      %319 = vsyncadd [#allocation4], %s318
      %s321 = sshll.u32 [#allocation7], 4
      %s322 = int_to_ptr.vmem [resolvable:$true] %s321
      %324 = dma.vmem_to_hbm [thread:$0]  %s322, 32, %s7, [#allocation4]
    $region41: #{tpu_custom_call.1} parent=1 // pred_fallthru
      _
    // Predicated region
    $region42: #{tpu_custom_call.1} parent=1 // pred_check
      _
    $region43: #{tpu_custom_call.1} parent=1 // pred_check_branch
      %326 = sbr.rel (0) target = $region45
    $region44: #{tpu_custom_call.1} parent=1 // pred_region
      %327 = dma.done [#allocation4], 32
    $region45: #{tpu_custom_call.1} parent=1 // pred_fallthru
      _
    %328 = vsyncpa [#allocation3], 1
    %329 = vsyncpa [#allocation6], 1
    %330 = vsyncpa [#allocation4], 1

</llo_original>
